<compile_context>
chip_gen: v7x
topology: tpu7x:2x2x1
jax: 0.10.0
libtpu: 0.0.40
codegen_flags: <defaults>
</compile_context>

<pallas_src>
import functools
import math

import jax
import jax.numpy as jnp
from jax.experimental import pallas as pl
from jax.experimental.pallas import tpu as pltpu


def _round_up(x, m):
    return ((x + m - 1) // m) * m


# ----------------------------------------------------------------------------- kernels


def _epilogue(h_f32, b1_ref, w2_ref, b2_ref, o_ref):
    # h_f32: (TN, Hp) f32 dense pre-activation (bias not yet added).
    h = h_f32 + b1_ref[...].astype(jnp.float32)
    logits = jnp.dot(h.astype(w2_ref.dtype), w2_ref[...],
                     preferred_element_type=jnp.float32)
    logits = logits + b2_ref[...].astype(jnp.float32)
    # sigmoid epilogue stays f32; exp/recip live on the EUP slot.
    o_ref[...] = jax.nn.sigmoid(logits).astype(o_ref.dtype)


def _head_kernel_resident(x_ref, w1_ref, b1_ref, w2_ref, b2_ref, o_ref):
    # x_ref:  (TN, Hp) token tile           w1_ref: (Hp, Hp) = dense.weight^T (padded)
    # b1_ref: (1, Hp)                       w2_ref: (Hp, Lp) = out_proj.weight^T (padded)
    # b2_ref: (1, Lp)                       o_ref:  (TN, Lp) sigmoid(logits), lane dense
    h = jnp.dot(x_ref[...], w1_ref[...], preferred_element_type=jnp.float32)
    _epilogue(h, b1_ref, w2_ref, b2_ref, o_ref)


def _head_kernel_ktiled(x_ref, w1_ref, b1_ref, w2_ref, b2_ref, o_ref, h_acc):
    # Fallback when W1^T does not fit resident in VMEM: stream it over the contraction
    # dim (grid axis 1, "arbitrary") and accumulate the dense output in f32 scratch.
    k = pl.program_id(1)

    @pl.when(k == 0)
    def _():
        h_acc[...] = jnp.zeros_like(h_acc)

    h_acc[...] += jnp.dot(x_ref[...], w1_ref[...], preferred_element_type=jnp.float32)

    @pl.when(k == pl.num_programs(1) - 1)
    def _():
        _epilogue(h_acc[...], b1_ref, w2_ref, b2_ref, o_ref)


# ------------------------------------------------------------------ capability / budget


_BUFFERED1 = [None]  # tri-state cache: None = unknown, True/False = resolved


def _single_buffer_supported():
    """Probe once (eagerly) whether pl.Buffered(1) single-buffering of a grid-invariant
    operand is accepted and correct on this JAX/Mosaic version; otherwise fall back to
    the default double buffering (only costs VMEM capacity, never correctness)."""
    if _BUFFERED1[0] is None:
        try:
            def _probe(x_ref, w_ref, o_ref):
                o_ref[...] = x_ref[...] + w_ref[...]

            x = jnp.zeros((16, 128), jnp.float32)
            w = jnp.ones((8, 128), jnp.float32)
            out = pl.pallas_call(
                _probe,
                out_shape=jax.ShapeDtypeStruct((16, 128), jnp.float32),
                grid_spec=pltpu.PrefetchScalarGridSpec(
                    num_scalar_prefetch=0,
                    grid=(2,),
                    in_specs=[
                        pl.BlockSpec((8, 128), lambda i: (i, 0)),
                        pl.BlockSpec((8, 128), lambda i: (0, 0),
                                     pipeline_mode=pl.Buffered(1)),
                    ],
                    out_specs=pl.BlockSpec((8, 128), lambda i: (i, 0)),
                ),
            )(x, w)
            out = jax.block_until_ready(out)
            _BUFFERED1[0] = bool(jnp.allclose(out, 1.0))
        except Exception:
            _BUFFERED1[0] = False
    return _BUFFERED1[0]


@functools.lru_cache(maxsize=None)
def _vmem_budget_and_limit():
    """Generation-aware VMEM budget (v5e/v6e: 128 MiB, v7x: 64 MiB per core)."""
    cap = 64 * 1024 * 1024
    try:
        cap = int(pltpu.get_tpu_info().vmem_capacity_bytes)
    except Exception:
        pass
    limit = min(int(cap * 3 // 4), cap - (8 << 20))   # leave headroom for the compiler
    limit = max(limit, 16 << 20)
    budget = int(limit * 0.85)                        # what our tiles may plan to use
    return budget, limit


def _choose_tiles(n_tokens, hp, lp, x_bytes, w_bytes, o_bytes, budget):
    """Pick (mode, token_tile, k_tile). Conservatively assumes double-buffered allocation
    for the params even when pl.Buffered(1) is accepted."""
    fixed = 2 * (hp * hp + hp * lp + hp + lp) * w_bytes
    per_row = 2 * hp * x_bytes + 2 * lp * o_bytes + (hp + lp) * 4
    # Keep at least 2 token tiles so "parallel" can shard across v7x's two TensorCores
    # (costs at most one extra ~0.35us grid step on single-TC v5e/v6e).
    max_tn = max(8, min(_round_up(pl.cdiv(n_tokens, 2), 8), 4096))

    if fixed + 8 * per_row <= budget:                 # resident-weights fast path
        tn = (budget - fixed) // per_row
        tn = max(8, min((tn // 8) * 8, max_tn))
        return "resident", int(tn), None

    # K-tiled fallback: W2^T/b1/b2 resident, W1^T streamed over the contraction dim.
    tn = min(256, max_tn)
    fixed_k = 2 * (hp * lp + hp + lp) * w_bytes + tn * (2 * lp * o_bytes + hp * 4)
    m = hp // 128
    tk = 128
    for d in range(m, 0, -1):                         # tk must divide Hp exactly
        if m % d:
            continue
        cand = 128 * d
        if fixed_k + 2 * cand * (hp * w_bytes + tn * x_bytes) <= budget:
            tk = cand
            break
    return "ktiled", int(tn), int(tk)


# ----------------------------------------------------------------------------- wrapper


def prepare_head_params(dense_w, dense_b, out_w, out_b):
    """One-time parameter preparation (do NOT redo per forward call):
       pre-transpose PyTorch (out, in) weights to (in, out) and zero-pad in-features /
       num_labels up to multiples of 128 (full MXU depth, lane-dense stores)."""
    hidden_out, hidden_in = dense_w.shape
    assert hidden_out == hidden_in, "dense layer must be hidden -> hidden"
    num_labels = out_w.shape[0]
    hp = _round_up(max(hidden_in, 1), 128)
    lp = _round_up(max(num_labels, 1), 128)

    w1_t = jnp.zeros((hp, hp), dense_w.dtype).at[:hidden_in, :hidden_out].set(dense_w.T)
    b1 = jnp.zeros((1, hp), dense_b.dtype).at[0, :hidden_out].set(dense_b)
    w2_t = jnp.zeros((hp, lp), out_w.dtype).at[:hidden_in, :num_labels].set(out_w.T)
    b2 = jnp.zeros((1, lp), out_b.dtype).at[0, :num_labels].set(out_b)
    return {"w1_t": w1_t, "b1": b1, "w2_t": w2_t, "b2": b2,
            "hidden": hidden_in, "num_labels": num_labels, "hp": hp, "lp": lp}


def segmentator_classification_head_apply(features, params):
    """features: (..., hidden).  params: output of prepare_head_params()."""
    *lead, hidden = features.shape
    assert hidden == params["hidden"]
    hp, lp, num_labels = params["hp"], params["lp"], params["num_labels"]
    w1_t, b1, w2_t, b2 = params["w1_t"], params["b1"], params["w2_t"], params["b2"]

    n_tokens = math.prod(lead) if lead else 1
    x2d = features.reshape(n_tokens, hidden)
    n_pad = _round_up(max(n_tokens, 1), 8)
    if hp != hidden or n_pad != n_tokens:
        x2d = jnp.pad(x2d, ((0, n_pad - n_tokens), (0, hp - hidden)))

    budget, vmem_limit = _vmem_budget_and_limit()
    mode, tn, tk = _choose_tiles(
        n_pad, hp, lp,
        x_bytes=x2d.dtype.itemsize,
        w_bytes=w1_t.dtype.itemsize,
        o_bytes=features.dtype.itemsize,
        budget=budget,
    )

    param_mode = pl.Buffered(1) if _single_buffer_supported() else None

    def _const_spec(shape, index_map):
        # Grid-invariant operand: single-buffer it when the JAX version supports it.
        if param_mode is not None:
            return pl.BlockSpec(shape, index_map, pipeline_mode=param_mode)
        return pl.BlockSpec(shape, index_map)

    cost = pl.CostEstimate(
        flops=2 * n_pad * hp * (hp + lp),
        transcendentals=n_pad * lp,
        bytes_accessed=(x2d.size * x2d.dtype.itemsize
                        + w1_t.size * w1_t.dtype.itemsize
                        + w2_t.size * w2_t.dtype.itemsize
                        + b1.size * b1.dtype.itemsize
                        + b2.size * b2.dtype.itemsize
                        + n_pad * lp * features.dtype.itemsize),
    )

    if mode == "resident":
        out2d = pl.pallas_call(
            _head_kernel_resident,
            out_shape=jax.ShapeDtypeStruct((n_pad, lp), features.dtype),
            grid_spec=pltpu.PrefetchScalarGridSpec(
                num_scalar_prefetch=0,
                grid=(pl.cdiv(n_pad, tn),),
                in_specs=[
                    pl.BlockSpec((tn, hp), lambda i: (i, 0)),   # x: streamed (double-buffered)
                    _const_spec((hp, hp), lambda i: (0, 0)),    # W1^T: VMEM-resident
                    _const_spec((1, hp), lambda i: (0, 0)),     # b1
                    _const_spec((hp, lp), lambda i: (0, 0)),    # W2^T: VMEM-resident
                    _const_spec((1, lp), lambda i: (0, 0)),     # b2
                ],
                out_specs=pl.BlockSpec((tn, lp), lambda i: (i, 0)),
            ),
            compiler_params=pltpu.CompilerParams(
                dimension_semantics=("parallel",),              # shards tokens across v7x TCs
                vmem_limit_bytes=vmem_limit,
            ),
            cost_estimate=cost,
        )(x2d, w1_t, b1, w2_t, b2)
    else:
        nk = hp // tk
        out2d = pl.pallas_call(
            _head_kernel_ktiled,
            out_shape=jax.ShapeDtypeStruct((n_pad, lp), features.dtype),
            grid_spec=pltpu.PrefetchScalarGridSpec(
                num_scalar_prefetch=0,
                grid=(pl.cdiv(n_pad, tn), nk),
                in_specs=[
                    pl.BlockSpec((tn, tk), lambda i, k: (i, k)),   # x tile
                    pl.BlockSpec((tk, hp), lambda i, k: (k, 0)),   # W1^T streamed over K
                    _const_spec((1, hp), lambda i, k: (0, 0)),     # b1
                    _const_spec((hp, lp), lambda i, k: (0, 0)),    # W2^T resident
                    _const_spec((1, lp), lambda i, k: (0, 0)),     # b2
                ],
                out_specs=pl.BlockSpec((tn, lp), lambda i, k: (i, 0)),
                scratch_shapes=[pltpu.VMEM((tn, hp), jnp.float32)],
            ),
            compiler_params=pltpu.CompilerParams(
                dimension_semantics=("parallel", "arbitrary"),
                vmem_limit_bytes=vmem_limit,
            ),
            cost_estimate=cost,
        )(x2d, w1_t, b1, w2_t, b2)

    out = out2d[:n_tokens, :num_labels]
    return out.reshape(*lead, num_labels)


def segmentator_classification_head(features, dense_w, dense_b, out_w, out_b):
    """Convenience wrapper taking raw PyTorch-layout parameters. For repeated calls,
    run prepare_head_params() once and call segmentator_classification_head_apply()."""
    return segmentator_classification_head_apply(
        features, prepare_head_params(dense_w, dense_b, out_w, out_b))


if __name__ == "__main__":
    # config: hidden_size=32, num_labels=2, classifier_dropout=0.1 (eval mode)
    batch, seq, hidden, num_labels = 2, 8, 32, 2

    key = jax.random.PRNGKey(0)
    k_feat, k_w1, k_b1, k_w2, k_b2 = jax.random.split(key, 5)

    features = jax.random.normal(k_feat, (batch, seq, hidden), dtype=jnp.float32)
    # PyTorch Linear convention: weight (out_features, in_features), bias (out_features,)
    dense_w = jax.random.normal(k_w1, (hidden, hidden), dtype=jnp.float32) * 0.05
    dense_b = jax.random.normal(k_b1, (hidden,), dtype=jnp.float32) * 0.05
    out_w = jax.random.normal(k_w2, (num_labels, hidden), dtype=jnp.float32) * 0.05
    out_b = jax.random.normal(k_b2, (num_labels,), dtype=jnp.float32) * 0.05

    params = prepare_head_params(dense_w, dense_b, out_w, out_b)   # one-time prep
    out = segmentator_classification_head_apply(features, params)
    out = jax.block_until_ready(out)

    # reference check in plain JAX
    ref = jax.nn.sigmoid((features @ dense_w.T + dense_b) @ out_w.T + out_b)
    assert out.shape == (batch, seq, num_labels)
    assert jnp.allclose(out, ref, atol=1e-5), "mismatch vs reference"

    print("KERNEL_OK")
</pallas_src>

<mosaic_0001>
module attributes {stable_mosaic.version = 11 : i64} {
  func.func @_probe(%arg0: i32, %arg1: memref<8x128xf32, #tpu.memory_space<vmem>>, %arg2: memref<8x128xf32, #tpu.memory_space<vmem>>, %arg3: memref<8x128xf32, #tpu.memory_space<vmem>>) attributes {dimension_semantics = [#tpu.dimension_semantics<arbitrary>], iteration_bounds = array<i64: 2>, scalar_prefetch = 0 : i64, scratch_operands = 0 : i64, tpu.core_type = #tpu.core_type<tc>, window_params = [{transform_indices = @transform_0, window_bounds = array<i64: 8, 128>}, {pipeline_mode = #tpu.pipeline_mode<synchronous>, transform_indices = @transform_1, window_bounds = array<i64: 8, 128>}, {transform_indices = @transform_2, window_bounds = array<i64: 8, 128>}]} {
    %c0 = arith.constant 0 : index
    %c0_0 = arith.constant 0 : index
    %0 = vector.load %arg1[%c0, %c0_0] : memref<8x128xf32, #tpu.memory_space<vmem>>, vector<8x128xf32>
    %c0_1 = arith.constant 0 : index
    %c0_2 = arith.constant 0 : index
    %1 = vector.load %arg2[%c0_1, %c0_2] : memref<8x128xf32, #tpu.memory_space<vmem>>, vector<8x128xf32>
    %2 = arith.addf %0, %1 : vector<8x128xf32>
    %c0_3 = arith.constant 0 : index
    %c0_4 = arith.constant 0 : index
    %3 = vector.load %arg3[%c0_3, %c0_4] : memref<8x128xf32, #tpu.memory_space<vmem>>, vector<8x128xf32>
    tpu.vector_store %arg3[%c0_3, %c0_4], %2 {strides = array<i32>} : memref<8x128xf32, #tpu.memory_space<vmem>>, vector<8x128xf32>,
    return
  }
  func.func @transform_0(%arg0: i32) -> (i32, i32) {
    %c0_i32 = arith.constant 0 : i32
    %c0_i32_0 = arith.constant 0 : i32
    return %arg0, %c0_i32 : i32, i32
  }
  func.func @transform_1(%arg0: i32) -> (i32, i32) {
    %c0_i32 = arith.constant 0 : i32
    %c0_i32_0 = arith.constant 0 : i32
    %c0_i32_1 = arith.constant 0 : i32
    return %c0_i32, %c0_i32_0 : i32, i32
  }
  func.func @transform_2(%arg0: i32) -> (i32, i32) {
    %c0_i32 = arith.constant 0 : i32
    %c0_i32_0 = arith.constant 0 : i32
    return %arg0, %c0_i32 : i32, i32
  }
}

module attributes {stable_mosaic.version = 11 : i64} {
  func.func @_head_kernel_resident(%arg0: i32, %arg1: memref<8x128xf32, #tpu.memory_space<vmem>>, %arg2: memref<128x128xf32, #tpu.memory_space<vmem>>, %arg3: memref<1x128xf32, #tpu.memory_space<vmem>>, %arg4: memref<128x128xf32, #tpu.memory_space<vmem>>, %arg5: memref<1x128xf32, #tpu.memory_space<vmem>>, %arg6: memref<8x128xf32, #tpu.memory_space<vmem>>) attributes {dimension_semantics = [#tpu.dimension_semantics<parallel>], iteration_bounds = array<i64: 2>, scalar_prefetch = 0 : i64, scratch_operands = 0 : i64, tpu.core_type = #tpu.core_type<tc>, window_params = [{transform_indices = @transform_0, window_bounds = array<i64: 8, 128>}, {pipeline_mode = #tpu.pipeline_mode<synchronous>, transform_indices = @transform_1, window_bounds = array<i64: 128, 128>}, {pipeline_mode = #tpu.pipeline_mode<synchronous>, transform_indices = @transform_2, window_bounds = array<i64: 1, 128>}, {pipeline_mode = #tpu.pipeline_mode<synchronous>, transform_indices = @transform_3, window_bounds = array<i64: 128, 128>}, {pipeline_mode = #tpu.pipeline_mode<synchronous>, transform_indices = @transform_4, window_bounds = array<i64: 1, 128>}, {transform_indices = @transform_5, window_bounds = array<i64: 8, 128>}]} {
    %c0 = arith.constant 0 : index
    %c0_0 = arith.constant 0 : index
    %0 = vector.load %arg1[%c0, %c0_0] : memref<8x128xf32, #tpu.memory_space<vmem>>, vector<8x128xf32>
    %c0_1 = arith.constant 0 : index
    %c0_2 = arith.constant 0 : index
    %1 = vector.load %arg2[%c0_1, %c0_2] : memref<128x128xf32, #tpu.memory_space<vmem>>, vector<128x128xf32>
    %cst = arith.constant dense<0.000000e+00> : vector<8x128xf32>
    %2 = tpu.matmul %0, %1, %cst {dimension_numbers = #tpu.dot_dimension_numbers<[1], [0], [0], [1], [0, 0, 1, 1], [], []>} : vector<8x128xf32>, vector<128x128xf32>, vector<8x128xf32> -> vector<8x128xf32>
    %c0_3 = arith.constant 0 : index
    %c0_4 = arith.constant 0 : index
    %3 = vector.load %arg3[%c0_3, %c0_4] : memref<1x128xf32, #tpu.memory_space<vmem>>, vector<1x128xf32>
    %4 = vector.broadcast %3 : vector<1x128xf32> to vector<8x128xf32>
    %5 = arith.addf %2, %4 : vector<8x128xf32>
    %c0_5 = arith.constant 0 : index
    %c0_6 = arith.constant 0 : index
    %6 = vector.load %arg4[%c0_5, %c0_6] : memref<128x128xf32, #tpu.memory_space<vmem>>, vector<128x128xf32>
    %cst_7 = arith.constant dense<0.000000e+00> : vector<8x128xf32>
    %7 = tpu.matmul %5, %6, %cst_7 {dimension_numbers = #tpu.dot_dimension_numbers<[1], [0], [0], [1], [0, 0, 1, 1], [], []>} : vector<8x128xf32>, vector<128x128xf32>, vector<8x128xf32> -> vector<8x128xf32>
    %c0_8 = arith.constant 0 : index
    %c0_9 = arith.constant 0 : index
    %8 = vector.load %arg5[%c0_8, %c0_9] : memref<1x128xf32, #tpu.memory_space<vmem>>, vector<1x128xf32>
    %9 = vector.broadcast %8 : vector<1x128xf32> to vector<8x128xf32>
    %10 = arith.addf %7, %9 : vector<8x128xf32>
    %11 = arith.negf %10 : vector<8x128xf32>
    %12 = math.exp %11 : vector<8x128xf32>
    %cst_10 = arith.constant 1.000000e+00 : f32
    %13 = vector.broadcast %cst_10 : f32 to vector<8x128xf32>
    %14 = arith.addf %13, %12 : vector<8x128xf32>
    %15 = arith.divf %13, %14 : vector<8x128xf32>
    %c0_11 = arith.constant 0 : index
    %c0_12 = arith.constant 0 : index
    %16 = vector.load %arg6[%c0_11, %c0_12] : memref<8x128xf32, #tpu.memory_space<vmem>>, vector<8x128xf32>
    tpu.vector_store %arg6[%c0_11, %c0_12], %15 {strides = array<i32>} : memref<8x128xf32, #tpu.memory_space<vmem>>, vector<8x128xf32>,
    return
  }
  func.func @transform_0(%arg0: i32) -> (i32, i32) {
    %c0_i32 = arith.constant 0 : i32
    %c0_i32_0 = arith.constant 0 : i32
    return %arg0, %c0_i32 : i32, i32
  }
  func.func @transform_1(%arg0: i32) -> (i32, i32) {
    %c0_i32 = arith.constant 0 : i32
    %c0_i32_0 = arith.constant 0 : i32
    %c0_i32_1 = arith.constant 0 : i32
    return %c0_i32, %c0_i32_0 : i32, i32
  }
  func.func @transform_2(%arg0: i32) -> (i32, i32) {
    %c0_i32 = arith.constant 0 : i32
    %c0_i32_0 = arith.constant 0 : i32
    %c0_i32_1 = arith.constant 0 : i32
    return %c0_i32, %c0_i32_0 : i32, i32
  }
  func.func @transform_3(%arg0: i32) -> (i32, i32) {
    %c0_i32 = arith.constant 0 : i32
    %c0_i32_0 = arith.constant 0 : i32
    %c0_i32_1 = arith.constant 0 : i32
    return %c0_i32, %c0_i32_0 : i32, i32
  }
  func.func @transform_4(%arg0: i32) -> (i32, i32) {
    %c0_i32 = arith.constant 0 : i32
    %c0_i32_0 = arith.constant 0 : i32
    %c0_i32_1 = arith.constant 0 : i32
    return %c0_i32, %c0_i32_0 : i32, i32
  }
  func.func @transform_5(%arg0: i32) -> (i32, i32) {
    %c0_i32 = arith.constant 0 : i32
    %c0_i32_0 = arith.constant 0 : i32
    return %arg0, %c0_i32 : i32, i32
  }
}

</mosaic_0001>

<llo_original>
// kernel: tpu_custom_call.1
$region0: #{tpu_custom_call.1}
  #allocation0 [shape = 'u32[]', space=smem, size = 0x4, offset = 0x4, fixed_abs, tag = 'smem constant byte address 0x4 - core index']
  #allocation1 [shape = 'u32[144,128]{1,0:T(1,128)}', space=vmem, size = 0x12000, scoped, tag = 'internal scratch']
  %s0 = inlined_call_operand.hbm [shape: f32[16,128], index: 0, kind: input, shape index: {}]
  %s1 = inlined_call_operand.hbm [shape: f32[8,128], index: 1, kind: input, shape index: {}]
  %s2 = inlined_call_operand.hbm [shape: f32[16,128], index: 2, kind: output, shape index: {}]
  %s3 = sld [smem:[#allocation0]]
  $region49: #{tpu_custom_call.1} parent=0
    _
  %s5 = ssub.s32 1, %s3
  %s6 = scalar_select 0, %s5, %s3
  $region1: #{tpu_custom_call.1} parent=0
    #allocation2 [shape = 'u8[8192]{0}', space=vmem, size = 0x2000, scoped, tag = 'input window, operand 0']
    #allocation3 [shape = 's32[2]{0}', space=sflag, size = 0x8, scoped, tag = 'scoped memory for tpu_custom_call.1']
    #allocation4 [shape = 's32[2]{0}', space=sflag, size = 0x8, scoped, tag = 'scoped memory for tpu_custom_call.1']
    #allocation5 [shape = 'u8[4096]{0}', space=vmem, size = 0x1000, scoped, tag = 'input window, operand 1, single buffered']
    #allocation6 [shape = 's32[1]{0}', space=sflag, size = 0x4, scoped, tag = 'scoped memory for tpu_custom_call.1']
    #allocation7 [shape = 'u8[8192]{0}', space=vmem, size = 0x2000, scoped, tag = 'output window, operand 0']
    %7 = vsyncpa [#allocation3], 0
    %s8 = scalar_lea.sflag [#allocation3], 1
    %9 = vsyncpa %s8, 0
    %10 = vsyncpa [#allocation6], 0
    %11 = vsyncpa [#allocation4], 0
    %s12 = scalar_lea.sflag [#allocation4], 1
    %13 = vsyncpa %s12, 0
    loop: start=0, step=1, limit=4
    $region2: #{tpu_custom_call.1} parent=1 // loop_pre_header
      _
    $region3: #{tpu_custom_call.1} parent=1 // loop_header
      %s15 = sphi 0, %s19
      %p16 = scmp.ge.s32.totalorder %s15, 4
      %s25 = sphi 0, %s27
      %s28 = sphi 0, %s25
      %s29 = sphi 0, %s28
      %s45 = sphi 0, %s29
      %s49 = sphi 0, %s49
      %s51 = sphi 0, %s49
      %s52 = sphi 0, %s51
      %s66 = sphi 0, %s52
      %s72 = sphi 0, %s74
      %s75 = sphi 0, %s72
      %s76 = sphi 0, %s75
      %s92 = sphi 0, %s76
    $region4: #{tpu_custom_call.1} parent=1 // loop_header_branch
      %18 = sbr.rel (%p16) target = $region8
    $region5: #{tpu_custom_call.1} parent=1 // loop_body
      %s20 = ssub.s32 %s15, 1
      %s21 = ssub.s32 %s15, 2
      %s22 = sadd.s32 %s15, 1
      %s23 = ssub.s32 %s15, %s22
      %p24 = scmp.eq.s32.totalorder %s23, 0
      %s26 = sadd.s32 %s25, 1
      %s27 = scalar_select %p24, %s25, %s26
      %p30 = pneg %p24
      %p31 = scmp.eq.s32.totalorder %s15, 1
      %p32 = por %p30, %p31
      %p33 = scmp.ne.s32.totalorder %s25, %s28
      %p34 = scmp.eq.s32.totalorder %s15, 0
      %p35 = por %p33, %p34
      %p36 = scmp.ne.s32.totalorder %s25, %s28
      %p37 = scmp.eq.s32.totalorder %s20, 1
      %p38 = por %p36, %p37
      %p39 = scmp.ne.s32.totalorder %s28, %s29
      %p40 = scmp.eq.s32.totalorder %s20, 0
      %p41 = por %p39, %p40
      %p42 = scmp.ne.s32.totalorder %s28, %s29
      %p43 = scmp.eq.s32.totalorder %s21, 1
      %p44 = por %p42, %p43
      %p46 = scmp.ne.s32.totalorder %s29, %s45
      %p47 = scmp.eq.s32.totalorder %s21, 0
      %p48 = por %p46, %p47
      %s50 = sadd.s32 %s49, 1
      %p53 = scmp.eq.s32.totalorder %s15, 1
      %p54 = scmp.ne.s32.totalorder %s49, %s51
      %p55 = scmp.eq.s32.totalorder %s15, 0
      %p56 = por %p54, %p55
      %p57 = scmp.ne.s32.totalorder %s49, %s51
      %p58 = scmp.eq.s32.totalorder %s20, 1
      %p59 = por %p57, %p58
      %p60 = scmp.ne.s32.totalorder %s51, %s52
      %p61 = scmp.eq.s32.totalorder %s20, 0
      %p62 = por %p60, %p61
      %p63 = scmp.ne.s32.totalorder %s51, %s52
      %p64 = scmp.eq.s32.totalorder %s21, 1
      %p65 = por %p63, %p64
      %p67 = scmp.ne.s32.totalorder %s52, %s66
      %p68 = scmp.eq.s32.totalorder %s21, 0
      %p69 = por %p67, %p68
      %s70 = ssub.s32 %s15, %s22
      %p71 = scmp.eq.s32.totalorder %s70, 0
      %s73 = sadd.s32 %s72, 1
      %s74 = scalar_select %p71, %s72, %s73
      %p77 = pneg %p71
      %p78 = scmp.eq.s32.totalorder %s15, 1
      %p79 = por %p77, %p78
      %p80 = scmp.ne.s32.totalorder %s72, %s75
      %p81 = scmp.eq.s32.totalorder %s15, 0
      %p82 = por %p80, %p81
      %p83 = scmp.ne.s32.totalorder %s72, %s75
      %p84 = scmp.eq.s32.totalorder %s20, 1
      %p85 = por %p83, %p84
      %p86 = scmp.ne.s32.totalorder %s75, %s76
      %p87 = scmp.eq.s32.totalorder %s20, 0
      %p88 = por %p86, %p87
      %p89 = scmp.ne.s32.totalorder %s75, %s76
      %p90 = scmp.eq.s32.totalorder %s21, 1
      %p91 = por %p89, %p90
      %p93 = scmp.ne.s32.totalorder %s76, %s92
      %p94 = scmp.eq.s32.totalorder %s21, 0
      %p95 = por %p93, %p94
      %p96 = scmp.le.s32.totalorder 1, %s15
      %p97 = scmp.lt.s32.totalorder %s15, 3
      %p98 = pnand %p96, %p97
      %p99 = pneg %p98
      // Predicated region
      $region9: #{tpu_custom_call.1} parent=5 // pred_check
        _
      $region10: #{tpu_custom_call.1} parent=5 // pred_check_branch
        %101 = sbr.rel (%p98) target = $region12
      $region11: #{tpu_custom_call.1} parent=5 // pred_region
        %s102 = ssub.s32 %s15, 1
        // Predicated region
        $region13: #{tpu_custom_call.1} parent=11 // pred_check
          %p103 = pneg %p62
        $region14: #{tpu_custom_call.1} parent=11 // pred_check_branch
          %105 = sbr.rel (%p103) target = $region16
        $region15: #{tpu_custom_call.1} parent=11 // pred_region
          %s107 = ssub.s32 128, 128
          %108 = vsyncadd [#allocation6], %s107
          %s110 = sshll.u32 [#allocation5], 4
          %s111 = int_to_ptr.vmem [resolvable:$true] %s110
          %113 = dma.hbm_to_vmem [thread:$0]  %s1, 128, %s111, [#allocation6]
        $region16: #{tpu_custom_call.1} parent=11 // pred_fallthru
          _
      $region12: #{tpu_custom_call.1} parent=5 // pred_fallthru
        _
      %p114 = scmp.lt.s32.totalorder %s15, 2
      // Predicated region
      $region17: #{tpu_custom_call.1} parent=5 // pred_check
        %p115 = pneg %p114
      $region18: #{tpu_custom_call.1} parent=5 // pred_check_branch
        %117 = sbr.rel (%p115) target = $region20
      $region19: #{tpu_custom_call.1} parent=5 // pred_region
        // Predicated region
        $region21: #{tpu_custom_call.1} parent=19 // pred_check
          %p118 = pneg %p35
        $region22: #{tpu_custom_call.1} parent=19 // pred_check_branch
          %120 = sbr.rel (%p118) target = $region24
        $region23: #{tpu_custom_call.1} parent=19 // pred_region
          %s121 = sand.u32 %s25, 1
          %s122 = scalar_lea.sflag [#allocation3], %s121
          %s123 = sand.u32 %s25, 1
          %s124 = smul.addr %s123, 8
          %s125 = scalar_lea.vmem [#allocation2], %s124
          %s127 = ssub.s32 128, 128
          %128 = vsyncadd %s122, %s127
          %s129 = smul.addr %s15, 128
          %s130 = scalar_lea.hbm %s0, %s129
          %s132 = sshll.u32 %s125, 4
          %s133 = int_to_ptr.vmem [resolvable:$true] %s132
          %135 = dma.hbm_to_vmem [thread:$0]  %s130, 128, %s133, %s122
        $region24: #{tpu_custom_call.1} parent=19 // pred_fallthru
          _
      $region20: #{tpu_custom_call.1} parent=5 // pred_fallthru
        _
      %p136 = scmp.le.s32.totalorder 1, %s15
      %p137 = scmp.lt.s32.totalorder %s15, 3
      %p138 = pnand %p136, %p137
      %p139 = pneg %p138
      // Predicated region
      $region25: #{tpu_custom_call.1} parent=5 // pred_check
        _
      $region26: #{tpu_custom_call.1} parent=5 // pred_check_branch
        %141 = sbr.rel (%p138) target = $region28
      $region27: #{tpu_custom_call.1} parent=5 // pred_region
        %s142 = ssub.s32 %s15, 1
        %s143 = sand.u32 %s28, 1
        %s144 = scalar_lea.sflag [#allocation3], %s143
        %s145 = sand.u32 %s28, 1
        %s146 = smul.addr %s145, 8
        %s147 = scalar_lea.vmem [#allocation2], %s146
        // Predicated region
        $region29: #{tpu_custom_call.1} parent=27 // pred_check
          %p148 = pneg %p41
        $region30: #{tpu_custom_call.1} parent=27 // pred_check_branch
          %150 = sbr.rel (%p148) target = $region32
        $region31: #{tpu_custom_call.1} parent=27 // pred_region
          %151 = dma.done %s144, 128
        $region32: #{tpu_custom_call.1} parent=27 // pred_fallthru
          _
        // Predicated region
        $region33: #{tpu_custom_call.1} parent=27 // pred_check
          %p152 = pneg %p62
        $region34: #{tpu_custom_call.1} parent=27 // pred_check_branch
          %154 = sbr.rel (%p152) target = $region36
        $region35: #{tpu_custom_call.1} parent=27 // pred_region
          %155 = dma.done [#allocation6], 128
        $region36: #{tpu_custom_call.1} parent=27 // pred_fallthru
          _
        %s156 = sand.u32 %s28, 1
        %s157 = scalar_lea.sflag [#allocation3], %s156
        %s158 = sand.u32 %s28, 1
        %s159 = smul.addr %s158, 8
        %s160 = scalar_lea.vmem [#allocation2], %s159
        %p161 = pneg %p41
        %p162 = pneg %p38
        %p163 = pneg %p62
        %p164 = pneg %p59
        %p165 = pneg %p88
        %p166 = pneg %p85
        %s167 = sand.u32 %s75, 1
        %s168 = scalar_lea.sflag [#allocation4], %s167
        %s169 = sand.u32 %s75, 1
        %s170 = smul.addr %s169, 8
        %s171 = scalar_lea.vmem [#allocation7], %s170
        %v172 = vld [vmem:[%s147] sm:$0xff]
        %v173 = vld [vmem:[#allocation5] sm:$0xff]
        %v174 = vadd.f32 %v172, %v173
        %175 = vst [vmem:[%s171] sm:$0xff] %v174
        %s176 = sand.u32 %s75, 1
        %s177 = scalar_lea.sflag [#allocation4], %s176
        %s178 = sand.u32 %s75, 1
        %s179 = smul.addr %s178, 8
        %s180 = scalar_lea.vmem [#allocation7], %s179
        // Predicated region
        $region37: #{tpu_custom_call.1} parent=27 // pred_check
          %p181 = pneg %p85
        $region38: #{tpu_custom_call.1} parent=27 // pred_check_branch
          %183 = sbr.rel (%p181) target = $region40
        $region39: #{tpu_custom_call.1} parent=27 // pred_region
          %s185 = ssub.s32 128, 128
          %186 = vsyncadd %s177, %s185
          %s187 = smul.addr %s20, 128
          %s188 = scalar_lea.hbm %s2, %s187
          %s190 = sshll.u32 %s180, 4
          %s191 = int_to_ptr.vmem [resolvable:$true] %s190
          %193 = dma.vmem_to_hbm [thread:$0]  %s191, 128, %s188, %s177
        $region40: #{tpu_custom_call.1} parent=27 // pred_fallthru
          _
      $region28: #{tpu_custom_call.1} parent=5 // pred_fallthru
        _
      %p194 = scmp.le.s32.totalorder 2, %s15
      // Predicated region
      $region41: #{tpu_custom_call.1} parent=5 // pred_check
        %p195 = pneg %p194
      $region42: #{tpu_custom_call.1} parent=5 // pred_check_branch
        %197 = sbr.rel (%p195) target = $region44
      $region43: #{tpu_custom_call.1} parent=5 // pred_region
        %s198 = ssub.s32 %s15, 2
        // Predicated region
        $region45: #{tpu_custom_call.1} parent=43 // pred_check
          %p199 = pneg %p91
        $region46: #{tpu_custom_call.1} parent=43 // pred_check_branch
          %201 = sbr.rel (%p199) target = $region48
        $region47: #{tpu_custom_call.1} parent=43 // pred_region
          %s202 = sand.u32 %s76, 1
          %s203 = scalar_lea.sflag [#allocation4], %s202
          %s204 = sand.u32 %s76, 1
          %s205 = smul.addr %s204, 8
          %s206 = scalar_lea.vmem [#allocation7], %s205
          %207 = dma.done %s203, 128
        $region48: #{tpu_custom_call.1} parent=43 // pred_fallthru
          _
      $region44: #{tpu_custom_call.1} parent=5 // pred_fallthru
        _
    $region6: #{tpu_custom_call.1} parent=1 // loop_footer
      %s19 = sadd.s32 1, %s15
    $region7: #{tpu_custom_call.1} parent=1 // loop_footer_branch
      %14 = sbr.rel target = $region3
    $region8: #{tpu_custom_call.1} parent=1 // loop_exit
      _
    %208 = vsyncpa [#allocation3], 1
    %s209 = scalar_lea.sflag [#allocation3], 1
    %210 = vsyncpa %s209, 1
    %211 = vsyncpa [#allocation6], 1
    %212 = vsyncpa [#allocation4], 1
    %s213 = scalar_lea.sflag [#allocation4], 1
    %214 = vsyncpa %s213, 1

// kernel: tpu_custom_call.1
$region0: #{tpu_custom_call.1}
  #allocation0 [shape = 'u32[]', space=smem, size = 0x4, offset = 0x4, fixed_abs, tag = 'smem constant byte address 0x4 - core index']
  #allocation1 [shape = 'u32[144,128]{1,0:T(1,128)}', space=vmem, size = 0x12000, scoped, tag = 'internal scratch']
  %s0 = inlined_call_operand.hbm [shape: f32[16,128], index: 0, kind: input, shape index: {}]
  %s1 = inlined_call_operand.hbm [shape: f32[128,128], index: 1, kind: input, shape index: {}]
  %s2 = inlined_call_operand.vmem [shape: f32[1,128], index: 2, kind: input, shape index: {}]
  %s3 = inlined_call_operand.hbm [shape: f32[128,128], index: 3, kind: input, shape index: {}]
  %s4 = inlined_call_operand.vmem [shape: f32[1,128], index: 4, kind: input, shape index: {}]
  %s5 = inlined_call_operand.hbm [shape: f32[16,128], index: 5, kind: output, shape index: {}]
  %s6 = sld [smem:[#allocation0]]
  $region65: #{tpu_custom_call.1} parent=0
    _
  %s8 = ssub.s32 1, %s6
  %s9 = scalar_select 0, %s8, %s6
  $region1: #{tpu_custom_call.1} parent=0
    #allocation2 [shape = 'u8[8192]{0}', space=vmem, size = 0x2000, scoped, tag = 'input window, operand 0']
    #allocation3 [shape = 's32[2]{0}', space=sflag, size = 0x8, scoped, tag = 'scoped memory for tpu_custom_call.1']
    #allocation4 [shape = 's32[2]{0}', space=sflag, size = 0x8, scoped, tag = 'scoped memory for tpu_custom_call.1']
    #allocation5 [shape = 'u8[65536]{0}', space=vmem, size = 0x10000, scoped, tag = 'input window, operand 1, single buffered']
    #allocation6 [shape = 's32[1]{0}', space=sflag, size = 0x4, scoped, tag = 'scoped memory for tpu_custom_call.1']
    #allocation7 [shape = 'u8[65536]{0}', space=vmem, size = 0x10000, scoped, tag = 'input window, operand 3, single buffered']
    #allocation8 [shape = 'u8[8192]{0}', space=vmem, size = 0x2000, scoped, tag = 'output window, operand 0']
    %10 = vsyncpa [#allocation3], 0
    %s11 = scalar_lea.sflag [#allocation3], 1
    %12 = vsyncpa %s11, 0
    %13 = vsyncpa [#allocation6], 0
    %14 = vsyncpa [#allocation4], 0
    %s15 = scalar_lea.sflag [#allocation4], 1
    %16 = vsyncpa %s15, 0
    loop: start=0, step=1, limit=4
    $region2: #{tpu_custom_call.1} parent=1 // loop_pre_header
      _
    $region3: #{tpu_custom_call.1} parent=1 // loop_header
      %s18 = sphi 0, %s22
      %p19 = scmp.ge.s32.totalorder %s18, 4
      %s28 = sphi 0, %s30
      %s31 = sphi 0, %s28
      %s32 = sphi 0, %s31
      %s48 = sphi 0, %s32
      %s52 = sphi 0, %s52
      %s54 = sphi 0, %s52
      %s55 = sphi 0, %s54
      %s69 = sphi 0, %s55
      %s73 = sphi 0, %s73
      %s75 = sphi 0, %s73
      %s76 = sphi 0, %s75
      %s90 = sphi 0, %s76
      %s94 = sphi 0, %s94
      %s96 = sphi 0, %s94
      %s97 = sphi 0, %s96
      %s111 = sphi 0, %s97
      %s115 = sphi 0, %s115
      %s117 = sphi 0, %s115
      %s118 = sphi 0, %s117
      %s132 = sphi 0, %s118
      %s138 = sphi 0, %s140
      %s141 = sphi 0, %s138
      %s142 = sphi 0, %s141
      %s158 = sphi 0, %s142
    $region4: #{tpu_custom_call.1} parent=1 // loop_header_branch
      %21 = sbr.rel (%p19) target = $region8
    $region5: #{tpu_custom_call.1} parent=1 // loop_body
      %s23 = ssub.s32 %s18, 1
      %s24 = ssub.s32 %s18, 2
      %s25 = sadd.s32 %s18, 1
      %s26 = ssub.s32 %s18, %s25
      %p27 = scmp.eq.s32.totalorder %s26, 0
      %s29 = sadd.s32 %s28, 1
      %s30 = scalar_select %p27, %s28, %s29
      %p33 = pneg %p27
      %p34 = scmp.eq.s32.totalorder %s18, 1
      %p35 = por %p33, %p34
      %p36 = scmp.ne.s32.totalorder %s28, %s31
      %p37 = scmp.eq.s32.totalorder %s18, 0
      %p38 = por %p36, %p37
      %p39 = scmp.ne.s32.totalorder %s28, %s31
      %p40 = scmp.eq.s32.totalorder %s23, 1
      %p41 = por %p39, %p40
      %p42 = scmp.ne.s32.totalorder %s31, %s32
      %p43 = scmp.eq.s32.totalorder %s23, 0
      %p44 = por %p42, %p43
      %p45 = scmp.ne.s32.totalorder %s31, %s32
      %p46 = scmp.eq.s32.totalorder %s24, 1
      %p47 = por %p45, %p46
      %p49 = scmp.ne.s32.totalorder %s32, %s48
      %p50 = scmp.eq.s32.totalorder %s24, 0
      %p51 = por %p49, %p50
      %s53 = sadd.s32 %s52, 1
      %p56 = scmp.eq.s32.totalorder %s18, 1
      %p57 = scmp.ne.s32.totalorder %s52, %s54
      %p58 = scmp.eq.s32.totalorder %s18, 0
      %p59 = por %p57, %p58
      %p60 = scmp.ne.s32.totalorder %s52, %s54
      %p61 = scmp.eq.s32.totalorder %s23, 1
      %p62 = por %p60, %p61
      %p63 = scmp.ne.s32.totalorder %s54, %s55
      %p64 = scmp.eq.s32.totalorder %s23, 0
      %p65 = por %p63, %p64
      %p66 = scmp.ne.s32.totalorder %s54, %s55
      %p67 = scmp.eq.s32.totalorder %s24, 1
      %p68 = por %p66, %p67
      %p70 = scmp.ne.s32.totalorder %s55, %s69
      %p71 = scmp.eq.s32.totalorder %s24, 0
      %p72 = por %p70, %p71
      %s74 = sadd.s32 %s73, 1
      %p77 = scmp.eq.s32.totalorder %s18, 1
      %p78 = scmp.ne.s32.totalorder %s73, %s75
      %p79 = scmp.eq.s32.totalorder %s18, 0
      %p80 = por %p78, %p79
      %p81 = scmp.ne.s32.totalorder %s73, %s75
      %p82 = scmp.eq.s32.totalorder %s23, 1
      %p83 = por %p81, %p82
      %p84 = scmp.ne.s32.totalorder %s75, %s76
      %p85 = scmp.eq.s32.totalorder %s23, 0
      %p86 = por %p84, %p85
      %p87 = scmp.ne.s32.totalorder %s75, %s76
      %p88 = scmp.eq.s32.totalorder %s24, 1
      %p89 = por %p87, %p88
      %p91 = scmp.ne.s32.totalorder %s76, %s90
      %p92 = scmp.eq.s32.totalorder %s24, 0
      %p93 = por %p91, %p92
      %s95 = sadd.s32 %s94, 1
      %p98 = scmp.eq.s32.totalorder %s18, 1
      %p99 = scmp.ne.s32.totalorder %s94, %s96
      %p100 = scmp.eq.s32.totalorder %s18, 0
      %p101 = por %p99, %p100
      %p102 = scmp.ne.s32.totalorder %s94, %s96
      %p103 = scmp.eq.s32.totalorder %s23, 1
      %p104 = por %p102, %p103
      %p105 = scmp.ne.s32.totalorder %s96, %s97
      %p106 = scmp.eq.s32.totalorder %s23, 0
      %p107 = por %p105, %p106
      %p108 = scmp.ne.s32.totalorder %s96, %s97
      %p109 = scmp.eq.s32.totalorder %s24, 1
      %p110 = por %p108, %p109
      %p112 = scmp.ne.s32.totalorder %s97, %s111
      %p113 = scmp.eq.s32.totalorder %s24, 0
      %p114 = por %p112, %p113
      %s116 = sadd.s32 %s115, 1
      %p119 = scmp.eq.s32.totalorder %s18, 1
      %p120 = scmp.ne.s32.totalorder %s115, %s117
      %p121 = scmp.eq.s32.totalorder %s18, 0
      %p122 = por %p120, %p121
      %p123 = scmp.ne.s32.totalorder %s115, %s117
      %p124 = scmp.eq.s32.totalorder %s23, 1
      %p125 = por %p123, %p124
      %p126 = scmp.ne.s32.totalorder %s117, %s118
      %p127 = scmp.eq.s32.totalorder %s23, 0
      %p128 = por %p126, %p127
      %p129 = scmp.ne.s32.totalorder %s117, %s118
      %p130 = scmp.eq.s32.totalorder %s24, 1
      %p131 = por %p129, %p130
      %p133 = scmp.ne.s32.totalorder %s118, %s132
      %p134 = scmp.eq.s32.totalorder %s24, 0
      %p135 = por %p133, %p134
      %s136 = ssub.s32 %s18, %s25
      %p137 = scmp.eq.s32.totalorder %s136, 0
      %s139 = sadd.s32 %s138, 1
      %s140 = scalar_select %p137, %s138, %s139
      %p143 = pneg %p137
      %p144 = scmp.eq.s32.totalorder %s18, 1
      %p145 = por %p143, %p144
      %p146 = scmp.ne.s32.totalorder %s138, %s141
      %p147 = scmp.eq.s32.totalorder %s18, 0
      %p148 = por %p146, %p147
      %p149 = scmp.ne.s32.totalorder %s138, %s141
      %p150 = scmp.eq.s32.totalorder %s23, 1
      %p151 = por %p149, %p150
      %p152 = scmp.ne.s32.totalorder %s141, %s142
      %p153 = scmp.eq.s32.totalorder %s23, 0
      %p154 = por %p152, %p153
      %p155 = scmp.ne.s32.totalorder %s141, %s142
      %p156 = scmp.eq.s32.totalorder %s24, 1
      %p157 = por %p155, %p156
      %p159 = scmp.ne.s32.totalorder %s142, %s158
      %p160 = scmp.eq.s32.totalorder %s24, 0
      %p161 = por %p159, %p160
      %p162 = scmp.le.s32.totalorder 1, %s18
      %p163 = scmp.lt.s32.totalorder %s18, 3
      %p164 = pnand %p162, %p163
      %p165 = pneg %p164
      // Predicated region
      $region9: #{tpu_custom_call.1} parent=5 // pred_check
        _
      $region10: #{tpu_custom_call.1} parent=5 // pred_check_branch
        %167 = sbr.rel (%p164) target = $region12
      $region11: #{tpu_custom_call.1} parent=5 // pred_region
        %s168 = ssub.s32 %s18, 1
        // Predicated region
        $region13: #{tpu_custom_call.1} parent=11 // pred_check
          %p169 = pneg %p65
        $region14: #{tpu_custom_call.1} parent=11 // pred_check_branch
          %171 = sbr.rel (%p169) target = $region16
        $region15: #{tpu_custom_call.1} parent=11 // pred_region
          %s173 = ssub.s32 2048, 2048
          %174 = vsyncadd [#allocation6], %s173
          %s175 = sshll.u32 [#allocation5], 4
          %s176 = int_to_ptr.vmem [resolvable:$true] %s175
          %181 = dma.hbm_to_vmem [thread:$0]  %s1, 2048, %s176, [#allocation6], 128, 128, 8
        $region16: #{tpu_custom_call.1} parent=11 // pred_fallthru
          _
        // Predicated region
        $region17: #{tpu_custom_call.1} parent=11 // pred_check
          %p182 = pneg %p86
        $region18: #{tpu_custom_call.1} parent=11 // pred_check_branch
          %184 = sbr.rel (%p182) target = $region20
        $region19: #{tpu_custom_call.1} parent=11 // pred_region
          _
        $region20: #{tpu_custom_call.1} parent=11 // pred_fallthru
          _
        // Predicated region
        $region21: #{tpu_custom_call.1} parent=11 // pred_check
          %p185 = pneg %p107
        $region22: #{tpu_custom_call.1} parent=11 // pred_check_branch
          %187 = sbr.rel (%p185) target = $region24
        $region23: #{tpu_custom_call.1} parent=11 // pred_region
          %s189 = ssub.s32 2048, 2048
          %190 = vsyncadd [#allocation6], %s189
          %s191 = sshll.u32 [#allocation7], 4
          %s192 = int_to_ptr.vmem [resolvable:$true] %s191
          %197 = dma.hbm_to_vmem [thread:$0]  %s3, 2048, %s192, [#allocation6], 128, 128, 8
        $region24: #{tpu_custom_call.1} parent=11 // pred_fallthru
          _
        // Predicated region
        $region25: #{tpu_custom_call.1} parent=11 // pred_check
          %p198 = pneg %p128
        $region26: #{tpu_custom_call.1} parent=11 // pred_check_branch
          %200 = sbr.rel (%p198) target = $region28
        $region27: #{tpu_custom_call.1} parent=11 // pred_region
          _
        $region28: #{tpu_custom_call.1} parent=11 // pred_fallthru
          _
      $region12: #{tpu_custom_call.1} parent=5 // pred_fallthru
        _
      %p201 = scmp.lt.s32.totalorder %s18, 2
      // Predicated region
      $region29: #{tpu_custom_call.1} parent=5 // pred_check
        %p202 = pneg %p201
      $region30: #{tpu_custom_call.1} parent=5 // pred_check_branch
        %204 = sbr.rel (%p202) target = $region32
      $region31: #{tpu_custom_call.1} parent=5 // pred_region
        // Predicated region
        $region33: #{tpu_custom_call.1} parent=31 // pred_check
          %p205 = pneg %p38
        $region34: #{tpu_custom_call.1} parent=31 // pred_check_branch
          %207 = sbr.rel (%p205) target = $region36
        $region35: #{tpu_custom_call.1} parent=31 // pred_region
          %s208 = sand.u32 %s28, 1
          %s209 = scalar_lea.sflag [#allocation3], %s208
          %s210 = sand.u32 %s28, 1
          %s211 = smul.addr %s210, 8
          %s212 = scalar_lea.vmem [#allocation2], %s211
          %s214 = ssub.s32 128, 128
          %215 = vsyncadd %s209, %s214
          %s216 = smul.addr %s18, 128
          %s217 = scalar_lea.hbm %s0, %s216
          %s219 = sshll.u32 %s212, 4
          %s220 = int_to_ptr.vmem [resolvable:$true] %s219
          %222 = dma.hbm_to_vmem [thread:$0]  %s217, 128, %s220, %s209
        $region36: #{tpu_custom_call.1} parent=31 // pred_fallthru
          _
      $region32: #{tpu_custom_call.1} parent=5 // pred_fallthru
        _
      %p223 = scmp.le.s32.totalorder 1, %s18
      %p224 = scmp.lt.s32.totalorder %s18, 3
      %p225 = pnand %p223, %p224
      %p226 = pneg %p225
      // Predicated region
      $region37: #{tpu_custom_call.1} parent=5 // pred_check
        _
      $region38: #{tpu_custom_call.1} parent=5 // pred_check_branch
        %228 = sbr.rel (%p225) target = $region40
      $region39: #{tpu_custom_call.1} parent=5 // pred_region
        %s229 = ssub.s32 %s18, 1
        %s230 = sand.u32 %s31, 1
        %s231 = scalar_lea.sflag [#allocation3], %s230
        %s232 = sand.u32 %s31, 1
        %s233 = smul.addr %s232, 8
        %s234 = scalar_lea.vmem [#allocation2], %s233
        // Predicated region
        $region41: #{tpu_custom_call.1} parent=39 // pred_check
          %p235 = pneg %p44
        $region42: #{tpu_custom_call.1} parent=39 // pred_check_branch
          %237 = sbr.rel (%p235) target = $region44
        $region43: #{tpu_custom_call.1} parent=39 // pred_region
          %238 = dma.done %s231, 128
        $region44: #{tpu_custom_call.1} parent=39 // pred_fallthru
          _
        // Predicated region
        $region45: #{tpu_custom_call.1} parent=39 // pred_check
          %p239 = pneg %p65
        $region46: #{tpu_custom_call.1} parent=39 // pred_check_branch
          %241 = sbr.rel (%p239) target = $region48
        $region47: #{tpu_custom_call.1} parent=39 // pred_region
          %242 = dma.done [#allocation6], 2048
        $region48: #{tpu_custom_call.1} parent=39 // pred_fallthru
          _
        // Predicated region
        $region49: #{tpu_custom_call.1} parent=39 // pred_check
          %p243 = pneg %p107
        $region50: #{tpu_custom_call.1} parent=39 // pred_check_branch
          %245 = sbr.rel (%p243) target = $region52
        $region51: #{tpu_custom_call.1} parent=39 // pred_region
          %246 = dma.done [#allocation6], 2048
        $region52: #{tpu_custom_call.1} parent=39 // pred_fallthru
          _
        %s247 = sand.u32 %s31, 1
        %s248 = scalar_lea.sflag [#allocation3], %s247
        %s249 = sand.u32 %s31, 1
        %s250 = smul.addr %s249, 8
        %s251 = scalar_lea.vmem [#allocation2], %s250
        %p252 = pneg %p44
        %p253 = pneg %p41
        %p254 = pneg %p65
        %p255 = pneg %p62
        %p256 = pneg %p86
        %p257 = pneg %p83
        %p258 = pneg %p107
        %p259 = pneg %p104
        %p260 = pneg %p128
        %p261 = pneg %p125
        %p262 = pneg %p154
        %p263 = pneg %p151
        %s264 = sand.u32 %s141, 1
        %s265 = scalar_lea.sflag [#allocation4], %s264
        %s266 = sand.u32 %s141, 1
        %s267 = smul.addr %s266, 8
        %s268 = scalar_lea.vmem [#allocation8], %s267
        %v269 = vld [vmem:[%s234] sm:$0xff]
        %v270 = vld [vmem:[#allocation5] sm:$0xff]
        %v271 = vld [vmem:[#allocation5 + $0x8] sm:$0xff]
        %v272 = vld [vmem:[#allocation5 + $0x10] sm:$0xff]
        %v273 = vld [vmem:[#allocation5 + $0x18] sm:$0xff]
        %v274 = vld [vmem:[#allocation5 + $0x20] sm:$0xff]
        %v275 = vld [vmem:[#allocation5 + $0x28] sm:$0xff]
        %v276 = vld [vmem:[#allocation5 + $0x30] sm:$0xff]
        %v277 = vld [vmem:[#allocation5 + $0x38] sm:$0xff]
        %v278 = vld [vmem:[#allocation5 + $0x40] sm:$0xff]
        %v279 = vld [vmem:[#allocation5 + $0x48] sm:$0xff]
        %v280 = vld [vmem:[#allocation5 + $0x50] sm:$0xff]
        %v281 = vld [vmem:[#allocation5 + $0x58] sm:$0xff]
        %v282 = vld [vmem:[#allocation5 + $0x60] sm:$0xff]
        %v283 = vld [vmem:[#allocation5 + $0x68] sm:$0xff]
        %v284 = vld [vmem:[#allocation5 + $0x70] sm:$0xff]
        %v285 = vld [vmem:[#allocation5 + $0x78] sm:$0xff]
        %v286 = vld [vmem:[%s2] sm:$0x1]
        %v288 = vlaneseq
        %v289 = vshrl.u32 %v288, 7
        %v290 = vsub.s32 0, %v289
        %v291 = vrot.slane %v286, %v290
        %293 = vmatprep.subr.mxu0 0.0
        %294 = vmatpush1.msra.mxu0 %v270
        %295 = vmatprep.subr.mxu0 0.0
        %296 = vmatpush1.msra.mxu0 %v271
        %297 = vmatprep.subr.mxu0 0.0
        %298 = vmatpush1.msra.mxu0 %v272
        %299 = vmatprep.subr.mxu0 0.0
        %300 = vmatpush1.msra.mxu0 %v273
        %301 = vmatprep.subr.mxu0 0.0
        %302 = vmatpush1.msra.mxu0 %v274
        %303 = vmatprep.subr.mxu0 0.0
        %304 = vmatpush1.msra.mxu0 %v275
        %305 = vmatprep.subr.mxu0 0.0
        %306 = vmatpush1.msra.mxu0 %v276
        %307 = vmatprep.subr.mxu0 0.0
        %308 = vmatpush1.msra.mxu0 %v277
        %309 = vmatprep.subr.mxu0 0.0
        %310 = vmatpush1.msra.mxu0 %v278
        %311 = vmatprep.subr.mxu0 0.0
        %312 = vmatpush1.msra.mxu0 %v279
        %313 = vmatprep.subr.mxu0 0.0
        %314 = vmatpush1.msra.mxu0 %v280
        %315 = vmatprep.subr.mxu0 0.0
        %316 = vmatpush1.msra.mxu0 %v281
        %317 = vmatprep.subr.mxu0 0.0
        %318 = vmatpush1.msra.mxu0 %v282
        %319 = vmatprep.subr.mxu0 0.0
        %320 = vmatpush1.msra.mxu0 %v283
        %321 = vmatprep.subr.mxu0 0.0
        %322 = vmatpush1.msra.mxu0 %v284
        %323 = vmatprep.subr.mxu0 0.0
        %324 = vmatpush1.msra.mxu0 %v285
        %325 = vmatprep.subr.mxu0 0.0
        %326 = vmatpush1.msra.mxu0 0.0
        %327 = vmatprep.subr.mxu0 0.0
        %328 = vmatpush1.msra.mxu0 0.0
        %329 = vmatprep.subr.mxu0 0.0
        %330 = vmatpush1.msra.mxu0 0.0
        %331 = vmatprep.subr.mxu0 0.0
        %332 = vmatpush1.msra.mxu0 0.0
        %333 = vmatprep.subr.mxu0 0.0
        %334 = vmatpush1.msra.mxu0 0.0
        %335 = vmatprep.subr.mxu0 0.0
        %336 = vmatpush1.msra.mxu0 0.0
        %337 = vmatprep.subr.mxu0 0.0
        %338 = vmatpush1.msra.mxu0 0.0
        %339 = vmatprep.subr.mxu0 0.0
        %340 = vmatpush1.msra.mxu0 0.0
        %341 = vmatprep.subr.mxu0 0.0
        %342 = vmatpush1.msra.mxu0 0.0
        %343 = vmatprep.subr.mxu0 0.0
        %344 = vmatpush1.msra.mxu0 0.0
        %345 = vmatprep.subr.mxu0 0.0
        %346 = vmatpush1.msra.mxu0 0.0
        %347 = vmatprep.subr.mxu0 0.0
        %348 = vmatpush1.msra.mxu0 0.0
        %349 = vmatprep.subr.mxu0 0.0
        %350 = vmatpush1.msra.mxu0 0.0
        %351 = vmatprep.subr.mxu0 0.0
        %352 = vmatpush1.msra.mxu0 0.0
        %353 = vmatprep.subr.mxu0 0.0
        %354 = vmatpush1.msra.mxu0 0.0
        %355 = vmatprep.subr.mxu0 0.0
        %356 = vmatpush1.msra.mxu0 0.0
        %357 = vmatprep.mubr.f32.mxu0 0.0
        %358 = vmatmul.mubr.f32.gmra.mrb[0].mxu0 %v269
        %v359 = vpop.f32.mrb[0].mxu0
        %v360 = vadd.f32 %v291, %v359
        %v361 = vpop.f32.mrb[0].mxu0
        %362 = vdwg.mxu0
        %v363 = vld [vmem:[#allocation7] sm:$0xff]
        %v364 = vld [vmem:[#allocation7 + $0x8] sm:$0xff]
        %v365 = vld [vmem:[#allocation7 + $0x10] sm:$0xff]
        %v366 = vld [vmem:[#allocation7 + $0x18] sm:$0xff]
        %v367 = vld [vmem:[#allocation7 + $0x20] sm:$0xff]
        %v368 = vld [vmem:[#allocation7 + $0x28] sm:$0xff]
        %v369 = vld [vmem:[#allocation7 + $0x30] sm:$0xff]
        %v370 = vld [vmem:[#allocation7 + $0x38] sm:$0xff]
        %v371 = vld [vmem:[#allocation7 + $0x40] sm:$0xff]
        %v372 = vld [vmem:[#allocation7 + $0x48] sm:$0xff]
        %v373 = vld [vmem:[#allocation7 + $0x50] sm:$0xff]
        %v374 = vld [vmem:[#allocation7 + $0x58] sm:$0xff]
        %v375 = vld [vmem:[#allocation7 + $0x60] sm:$0xff]
        %v376 = vld [vmem:[#allocation7 + $0x68] sm:$0xff]
        %v377 = vld [vmem:[#allocation7 + $0x70] sm:$0xff]
        %v378 = vld [vmem:[#allocation7 + $0x78] sm:$0xff]
        %v379 = vld [vmem:[%s4] sm:$0x1]
        %v381 = vlaneseq
        %v382 = vshrl.u32 %v381, 7
        %v383 = vsub.s32 0, %v382
        %v384 = vrot.slane %v379, %v383
        %386 = vmatprep.subr.mxu0 0.0
        %387 = vmatpush1.msra.mxu0 %v363
        %388 = vmatprep.subr.mxu0 0.0
        %389 = vmatpush1.msra.mxu0 %v364
        %390 = vmatprep.subr.mxu0 0.0
        %391 = vmatpush1.msra.mxu0 %v365
        %392 = vmatprep.subr.mxu0 0.0
        %393 = vmatpush1.msra.mxu0 %v366
        %394 = vmatprep.subr.mxu0 0.0
        %395 = vmatpush1.msra.mxu0 %v367
        %396 = vmatprep.subr.mxu0 0.0
        %397 = vmatpush1.msra.mxu0 %v368
        %398 = vmatprep.subr.mxu0 0.0
        %399 = vmatpush1.msra.mxu0 %v369
        %400 = vmatprep.subr.mxu0 0.0
        %401 = vmatpush1.msra.mxu0 %v370
        %402 = vmatprep.subr.mxu0 0.0
        %403 = vmatpush1.msra.mxu0 %v371
        %404 = vmatprep.subr.mxu0 0.0
        %405 = vmatpush1.msra.mxu0 %v372
        %406 = vmatprep.subr.mxu0 0.0
        %407 = vmatpush1.msra.mxu0 %v373
        %408 = vmatprep.subr.mxu0 0.0
        %409 = vmatpush1.msra.mxu0 %v374
        %410 = vmatprep.subr.mxu0 0.0
        %411 = vmatpush1.msra.mxu0 %v375
        %412 = vmatprep.subr.mxu0 0.0
        %413 = vmatpush1.msra.mxu0 %v376
        %414 = vmatprep.subr.mxu0 0.0
        %415 = vmatpush1.msra.mxu0 %v377
        %416 = vmatprep.subr.mxu0 0.0
        %417 = vmatpush1.msra.mxu0 %v378
        %418 = vmatprep.subr.mxu0 0.0
        %419 = vmatpush1.msra.mxu0 0.0
        %420 = vmatprep.subr.mxu0 0.0
        %421 = vmatpush1.msra.mxu0 0.0
        %422 = vmatprep.subr.mxu0 0.0
        %423 = vmatpush1.msra.mxu0 0.0
        %424 = vmatprep.subr.mxu0 0.0
        %425 = vmatpush1.msra.mxu0 0.0
        %426 = vmatprep.subr.mxu0 0.0
        %427 = vmatpush1.msra.mxu0 0.0
        %428 = vmatprep.subr.mxu0 0.0
        %429 = vmatpush1.msra.mxu0 0.0
        %430 = vmatprep.subr.mxu0 0.0
        %431 = vmatpush1.msra.mxu0 0.0
        %432 = vmatprep.subr.mxu0 0.0
        %433 = vmatpush1.msra.mxu0 0.0
        %434 = vmatprep.subr.mxu0 0.0
        %435 = vmatpush1.msra.mxu0 0.0
        %436 = vmatprep.subr.mxu0 0.0
        %437 = vmatpush1.msra.mxu0 0.0
        %438 = vmatprep.subr.mxu0 0.0
        %439 = vmatpush1.msra.mxu0 0.0
        %440 = vmatprep.subr.mxu0 0.0
        %441 = vmatpush1.msra.mxu0 0.0
        %442 = vmatprep.subr.mxu0 0.0
        %443 = vmatpush1.msra.mxu0 0.0
        %444 = vmatprep.subr.mxu0 0.0
        %445 = vmatpush1.msra.mxu0 0.0
        %446 = vmatprep.subr.mxu0 0.0
        %447 = vmatpush1.msra.mxu0 0.0
        %448 = vmatprep.subr.mxu0 0.0
        %449 = vmatpush1.msra.mxu0 0.0
        %450 = vmatprep.mubr.f32.mxu0 0.0
        %451 = vmatmul.mubr.f32.gmra.mrb[0].mxu0 %v360
        %v452 = vpop.f32.mrb[0].mxu0
        %v453 = vadd.f32 %v384, %v452
        %v454 = vpop.f32.mrb[0].mxu0
        %455 = vdwg.mxu0
        %v456 = vxor.u32 %v453, 2147483648
        %v457 = vmul.f32 %v456, 1.442695
        %v458 = vpow.pop %v457
        %v459 = vadd.f32 %v458, 1.0
        %v460 = vrcp.pop %v459
        %v461 = vmul.f32 1.0, %v460
        %462 = vst [vmem:[%s268] sm:$0xff] %v461
        %s463 = sand.u32 %s141, 1
        %s464 = scalar_lea.sflag [#allocation4], %s463
        %s465 = sand.u32 %s141, 1
        %s466 = smul.addr %s465, 8
        %s467 = scalar_lea.vmem [#allocation8], %s466
        // Predicated region
        $region53: #{tpu_custom_call.1} parent=39 // pred_check
          %p468 = pneg %p151
        $region54: #{tpu_custom_call.1} parent=39 // pred_check_branch
          %470 = sbr.rel (%p468) target = $region56
        $region55: #{tpu_custom_call.1} parent=39 // pred_region
          %s472 = ssub.s32 128, 128
          %473 = vsyncadd %s464, %s472
          %s474 = smul.addr %s23, 128
          %s475 = scalar_lea.hbm %s5, %s474
          %s477 = sshll.u32 %s467, 4
          %s478 = int_to_ptr.vmem [resolvable:$true] %s477
          %480 = dma.vmem_to_hbm [thread:$0]  %s478, 128, %s475, %s464
        $region56: #{tpu_custom_call.1} parent=39 // pred_fallthru
          _
      $region40: #{tpu_custom_call.1} parent=5 // pred_fallthru
        _
      %p481 = scmp.le.s32.totalorder 2, %s18
      // Predicated region
      $region57: #{tpu_custom_call.1} parent=5 // pred_check
        %p482 = pneg %p481
      $region58: #{tpu_custom_call.1} parent=5 // pred_check_branch
        %484 = sbr.rel (%p482) target = $region60
      $region59: #{tpu_custom_call.1} parent=5 // pred_region
        %s485 = ssub.s32 %s18, 2
        // Predicated region
        $region61: #{tpu_custom_call.1} parent=59 // pred_check
          %p486 = pneg %p157
        $region62: #{tpu_custom_call.1} parent=59 // pred_check_branch
          %488 = sbr.rel (%p486) target = $region64
        $region63: #{tpu_custom_call.1} parent=59 // pred_region
          %s489 = sand.u32 %s142, 1
          %s490 = scalar_lea.sflag [#allocation4], %s489
          %s491 = sand.u32 %s142, 1
          %s492 = smul.addr %s491, 8
          %s493 = scalar_lea.vmem [#allocation8], %s492
          %494 = dma.done %s490, 128
        $region64: #{tpu_custom_call.1} parent=59 // pred_fallthru
          _
      $region60: #{tpu_custom_call.1} parent=5 // pred_fallthru
        _
    $region6: #{tpu_custom_call.1} parent=1 // loop_footer
      %s22 = sadd.s32 1, %s18
    $region7: #{tpu_custom_call.1} parent=1 // loop_footer_branch
      %17 = sbr.rel target = $region3
    $region8: #{tpu_custom_call.1} parent=1 // loop_exit
      _
    %495 = vsyncpa [#allocation3], 1
    %s496 = scalar_lea.sflag [#allocation3], 1
    %497 = vsyncpa %s496, 1
    %498 = vsyncpa [#allocation6], 1
    %499 = vsyncpa [#allocation4], 1
    %s500 = scalar_lea.sflag [#allocation4], 1
    %501 = vsyncpa %s500, 1

</llo_original>
